<compile_context>
chip_gen: v6e
topology: v6e:2x2x1
jax: 0.10.0
libtpu: 0.0.40
codegen_flags: <defaults>
</compile_context>

<pallas_src>
import functools

import jax
import jax.numpy as jnp
from jax import lax
from jax.experimental import pallas as pl
from jax.experimental.pallas import tpu as pltpu


def _abs_pow(x, p):
    """|x|^p with static Python-float p, specialized for the cheap cases."""
    if p == 2.0:
        return x * x                       # |x|^2 == x*x : single VPU multiply
    if p == float(int(p)) and int(p) >= 1:
        ax = jnp.abs(x)
        r = ax
        for _ in range(int(p) - 1):        # small integer p: repeated multiplies
            r = r * ax
        return r
    return jnp.power(jnp.abs(x), p)        # non-integer p: EUP exp/log path


def _accumulate(acc_ref, vals):
    """Accumulate the channel-partial sum of `vals` (c_tile, HW) into acc_ref.

    acc_ref is (8, HW) when c_tile % 8 == 0 (per-sublane partials, pure VPU
    adds, no per-step cross-sublane reduce) and (1, HW) otherwise.
    """
    ct, hw = vals.shape
    rows = acc_ref.shape[0]
    if rows == 8 and ct % 8 == 0:
        acc_ref[...] += jnp.sum(vals.reshape(ct // 8, 8, hw), axis=0)
    else:
        acc_ref[...] += jnp.sum(vals, axis=0, keepdims=True)


def _at_loss_kernel(s_ref, t_ref, out_ref, s_acc, t_acc, *, p, eps, total_c,
                    ragged):
    """Grid = (N, C_tiles). One batch element per n, channel-tile reduction over c.

    s_ref, t_ref : (c_tile, H*W) VMEM tiles (N axis squeezed)
    out_ref      : (8, 128) per-batch output block (only [0,0] is meaningful)
    s_acc, t_acc : (8 or 1, H*W) f32 scratch accumulators
    """
    c = pl.program_id(1)
    nc = pl.num_programs(1)

    @pl.when(c == 0)
    def _():
        s_acc[...] = jnp.zeros_like(s_acc)
        t_acc[...] = jnp.zeros_like(t_acc)

    xs = s_ref[...].astype(jnp.float32)
    xt = t_ref[...].astype(jnp.float32)
    vs = _abs_pow(xs, p)
    vt = _abs_pow(xt, p)

    if ragged:
        # Last channel tile overruns C; mask the garbage rows before summing.
        c_tile = s_ref.shape[0]
        remaining = total_c - c * c_tile
        row = lax.broadcasted_iota(jnp.int32, vs.shape, 0)
        valid = row < remaining
        vs = jnp.where(valid, vs, 0.0)
        vt = jnp.where(valid, vt, 0.0)

    _accumulate(s_acc, vs)
    _accumulate(t_acc, vt)

    @pl.when(c == nc - 1)
    def _():
        # Single 8->1 sublane reduce per map, once per batch element.
        am_s = jnp.sum(s_acc[...], axis=0, keepdims=True)
        am_t = jnp.sum(t_acc[...], axis=0, keepdims=True)
        # Frobenius norm over the flattened spatial axis; one scalar
        # reciprocal per map instead of a per-pixel divide.
        inv_s = 1.0 / (jnp.sqrt(jnp.sum(am_s * am_s)) + eps)
        inv_t = 1.0 / (jnp.sqrt(jnp.sum(am_t * am_t)) + eps)
        diff = am_s * inv_s - am_t * inv_t
        sq = jnp.sum(diff * diff)
        out_ref[...] = jnp.broadcast_to(sq, out_ref.shape).astype(out_ref.dtype)


def _sublane_pack(dtype):
    """Sublane packing granularity: 8 for f32, 16 for bf16/f16, 32 for int8/fp8."""
    itemsize = jnp.dtype(dtype).itemsize
    return max(8, 32 // max(1, itemsize))


def _vmem_limit_bytes():
    """Generation-aware scoped-VMEM limit (v7x has 64 MiB/TC vs 128 MiB)."""
    cap = 0
    try:
        info = pltpu.get_tpu_info()
        cap = int(getattr(info, "vmem_capacity_bytes", 0) or 0)
    except Exception:
        cap = 0
    if cap and cap <= 64 * 1024 * 1024:
        return 32 * 1024 * 1024            # v7x
    return 48 * 1024 * 1024                # v5e / v6e


def _pick_c_tile(C, HW, dtype, budget_bytes):
    """Largest channel tile whose double-buffered two-stream footprint fits
    `budget_bytes`, accounting for lane padding and the dtype's sublane pack."""
    itemsize = jnp.dtype(dtype).itemsize
    pack = _sublane_pack(dtype)
    hw_pad = pl.cdiv(HW, 128) * 128        # lane padding of the last dim
    per_row = hw_pad * itemsize            # bytes per channel row, padded
    # 2 input streams x 2 pipeline buffers per grid step.
    max_ct = max(1, budget_bytes // (4 * per_row))
    if max_ct >= C:
        return C                           # full channel dim in one tile
    ct = max(pack, (max_ct // pack) * pack)
    return min(ct, C)


def at_loss(fm_s, fm_t, p=2.0, eps=1e-6, c_tile=None):
    """Pallas equivalent of AT(p).forward(fm_s, fm_t). Inputs are NCHW."""
    assert fm_s.shape == fm_t.shape
    N, C, H, W = fm_s.shape
    HW = H * W

    # Free metadata reshape: lane-dense H*W last axis.
    fs = fm_s.reshape(N, C, HW)
    ft = fm_t.reshape(N, C, HW)

    itemsize = jnp.dtype(fm_s.dtype).itemsize
    pack = _sublane_pack(fm_s.dtype)
    vmem_limit = _vmem_limit_bytes()
    # Mem-bound kernel: per-input blocks beyond ~2 MiB buy nothing; also keep
    # at most half of the scoped limit for the pipelined input buffers.
    budget = min(vmem_limit // 2, 8 * 1024 * 1024)
    if c_tile is None:
        c_tile = _pick_c_tile(C, HW, fm_s.dtype, budget)
    assert c_tile == C or c_tile % pack == 0, (C, c_tile, pack)
    num_c = pl.cdiv(C, c_tile)
    ragged = (C % c_tile) != 0
    acc_rows = 8 if (c_tile % 8 == 0) else 1

    kernel = functools.partial(_at_loss_kernel, p=float(p), eps=float(eps),
                               total_c=C, ragged=ragged)

    integer_p = float(p) == float(int(p))
    cost = pl.CostEstimate(
        flops=6 * N * C * HW,
        transcendentals=0 if integer_p else 4 * N * C * HW,
        bytes_accessed=2 * N * C * HW * itemsize + N * 8 * 128 * 4,
    )

    partials = pl.pallas_call(
        kernel,
        out_shape=jax.ShapeDtypeStruct((N, 8, 128), jnp.float32),
        grid_spec=pltpu.PrefetchScalarGridSpec(
            num_scalar_prefetch=0,
            grid=(N, num_c),
            in_specs=[
                # N squeezed; (c_tile, H*W) blocks, channel tile advances with c.
                pl.BlockSpec((None, c_tile, HW), lambda n, c: (n, c, 0)),
                pl.BlockSpec((None, c_tile, HW), lambda n, c: (n, c, 0)),
            ],
            # Distinct per-batch output block -> N axis can be parallel (megacore).
            out_specs=pl.BlockSpec((None, 8, 128), lambda n, c: (n, 0, 0)),
            scratch_shapes=[
                pltpu.VMEM((acc_rows, HW), jnp.float32),
                pltpu.VMEM((acc_rows, HW), jnp.float32),
            ],
        ),
        compiler_params=pltpu.CompilerParams(
            dimension_semantics=("parallel", "arbitrary"),
            vmem_limit_bytes=vmem_limit,
        ),
        cost_estimate=cost,
    )(fs, ft)

    per_batch = partials[:, 0, 0]  # one squared-error sum per batch element
    # F.mse_loss default reduction='mean': attention maps have shape (N,1,H,W)
    mean = jnp.sum(per_batch) / jnp.float32(N * 1 * HW)
    return mean.astype(fm_s.dtype)


class AT:
    """Thin functional stand-in for the PyTorch AT module."""

    def __init__(self, p):
        self.p = p

    def __call__(self, fm_s, fm_t):
        return at_loss(fm_s, fm_t, p=self.p)


def _at_loss_ref(fm_s, fm_t, p=2.0, eps=1e-6):
    """Pure-JAX reference mirroring the PyTorch code."""
    def amap(fm):
        am = jnp.sum(jnp.power(jnp.abs(fm), p), axis=1, keepdims=True)
        norm = jnp.sqrt(jnp.sum(am * am, axis=(2, 3), keepdims=True))
        return am / (norm + eps)

    a, b = amap(fm_s), amap(fm_t)
    return jnp.mean((a - b) ** 2)


if __name__ == "__main__":
    key = jax.random.PRNGKey(0)
    k1, k2, k3, k4, k5, k6 = jax.random.split(key, 6)

    # Case 1: small NCHW feature maps, p=2 (x*x fast path; C=4 -> single tile).
    N, C, H, W = 2, 4, 16, 16
    fm_s = jax.random.normal(k1, (N, C, H, W), dtype=jnp.float32)
    fm_t = jax.random.normal(k2, (N, C, H, W), dtype=jnp.float32)

    loss = jax.block_until_ready(at_loss(fm_s, fm_t, p=2.0))
    ref = jax.block_until_ready(_at_loss_ref(fm_s, fm_t, p=2.0))
    assert jnp.allclose(loss, ref, rtol=1e-4, atol=1e-6), (loss, ref)

    # Odd integer p (repeated-multiply path).
    loss3 = jax.block_until_ready(at_loss(fm_s, fm_t, p=3.0))
    ref3 = jax.block_until_ready(_at_loss_ref(fm_s, fm_t, p=3.0))
    assert jnp.allclose(loss3, ref3, rtol=1e-4, atol=1e-6), (loss3, ref3)

    # Case 2: channel-tiled reduction path (C=16 split into two 8-channel tiles).
    N2, C2, H2, W2 = 2, 16, 16, 16
    fm_s2 = jax.random.normal(k3, (N2, C2, H2, W2), dtype=jnp.float32)
    fm_t2 = jax.random.normal(k4, (N2, C2, H2, W2), dtype=jnp.float32)
    loss2 = jax.block_until_ready(at_loss(fm_s2, fm_t2, p=2.0, c_tile=8))
    ref2 = jax.block_until_ready(_at_loss_ref(fm_s2, fm_t2, p=2.0))
    assert jnp.allclose(loss2, ref2, rtol=1e-4, atol=1e-6), (loss2, ref2)

    # Case 3: ragged channel count (C=12 with c_tile=8 -> masked last tile).
    N3, C3, H3, W3 = 2, 12, 16, 16
    fm_s3 = jax.random.normal(k5, (N3, C3, H3, W3), dtype=jnp.float32)
    fm_t3 = jax.random.normal(k6, (N3, C3, H3, W3), dtype=jnp.float32)
    loss_r = jax.block_until_ready(at_loss(fm_s3, fm_t3, p=2.0, c_tile=8))
    ref_r = jax.block_until_ready(_at_loss_ref(fm_s3, fm_t3, p=2.0))
    assert jnp.allclose(loss_r, ref_r, rtol=1e-4, atol=1e-6), (loss_r, ref_r)

    # Case 4: bf16 inputs (sublane-pack-aware tiling; f32 accumulation in-kernel).
    fm_s4 = fm_s3.astype(jnp.bfloat16)
    fm_t4 = fm_t3.astype(jnp.bfloat16)
    loss_b = jax.block_until_ready(at_loss(fm_s4, fm_t4, p=2.0))
    ref_b = jax.block_until_ready(
        _at_loss_ref(fm_s4.astype(jnp.float32), fm_t4.astype(jnp.float32), p=2.0))
    assert jnp.allclose(jnp.float32(loss_b), ref_b, rtol=2e-2, atol=1e-4), (loss_b, ref_b)

    print("KERNEL_OK")
</pallas_src>

<mosaic_0001>
module attributes {stable_mosaic.version = 11 : i64} {
  func.func @_at_loss_kernel(%arg0: i32, %arg1: i32, %arg2: memref<1x4x256xf32, #tpu.memory_space<vmem>>, %arg3: memref<1x4x256xf32, #tpu.memory_space<vmem>>, %arg4: memref<1x8x128xf32, #tpu.memory_space<vmem>>, %arg5: memref<1x256xf32, #tpu.memory_space<vmem>>, %arg6: memref<1x256xf32, #tpu.memory_space<vmem>>) attributes {dimension_semantics = [#tpu.dimension_semantics<parallel>, #tpu.dimension_semantics<arbitrary>], iteration_bounds = array<i64: 2, 1>, scalar_prefetch = 0 : i64, scratch_operands = 2 : i64, tpu.core_type = #tpu.core_type<tc>, window_params = [{transform_indices = @transform_0, window_bounds = array<i64: 1, 4, 256>}, {transform_indices = @transform_1, window_bounds = array<i64: 1, 4, 256>}, {transform_indices = @transform_2, window_bounds = array<i64: 1, 8, 128>}]} {
    %c0_i32 = arith.constant 0 : i32
    %0 = arith.cmpi eq, %arg1, %c0_i32 : i32
    %1 = arith.extui %0 : i1 to i32
    %c0_i32_0 = arith.constant 0 : i32
    %2 = arith.cmpi ne, %1, %c0_i32_0 : i32
    scf.if %2 {
      %cst_17 = arith.constant 0.000000e+00 : f32
      %22 = vector.broadcast %cst_17 : f32 to vector<1x256xf32>
      %c0_18 = arith.constant 0 : index
      %c0_19 = arith.constant 0 : index
      %23 = vector.load %arg5[%c0_18, %c0_19] : memref<1x256xf32, #tpu.memory_space<vmem>>, vector<1x256xf32>
      tpu.vector_store %arg5[%c0_18, %c0_19], %22 {strides = array<i32>} : memref<1x256xf32, #tpu.memory_space<vmem>>, vector<1x256xf32>,
      %cst_20 = arith.constant 0.000000e+00 : f32
      %24 = vector.broadcast %cst_20 : f32 to vector<1x256xf32>
      %c0_21 = arith.constant 0 : index
      %c0_22 = arith.constant 0 : index
      %25 = vector.load %arg6[%c0_21, %c0_22] : memref<1x256xf32, #tpu.memory_space<vmem>>, vector<1x256xf32>
      tpu.vector_store %arg6[%c0_21, %c0_22], %24 {strides = array<i32>} : memref<1x256xf32, #tpu.memory_space<vmem>>, vector<1x256xf32>,
    } else {
    }
    %c0 = arith.constant 0 : index
    %c0_1 = arith.constant 0 : index
    %c0_2 = arith.constant 0 : index
    %3 = vector.load %arg2[%c0, %c0_1, %c0_2] : memref<1x4x256xf32, #tpu.memory_space<vmem>>, vector<1x4x256xf32>
    %4 = vector.shape_cast %3 : vector<1x4x256xf32> to vector<4x256xf32>
    %c0_3 = arith.constant 0 : index
    %c0_4 = arith.constant 0 : index
    %c0_5 = arith.constant 0 : index
    %5 = vector.load %arg3[%c0_3, %c0_4, %c0_5] : memref<1x4x256xf32, #tpu.memory_space<vmem>>, vector<1x4x256xf32>
    %6 = vector.shape_cast %5 : vector<1x4x256xf32> to vector<4x256xf32>
    %7 = arith.mulf %4, %4 : vector<4x256xf32>
    %8 = arith.mulf %6, %6 : vector<4x256xf32>
    %c0_6 = arith.constant 0 : index
    %c0_7 = arith.constant 0 : index
    %9 = vector.load %arg5[%c0_6, %c0_7] : memref<1x256xf32, #tpu.memory_space<vmem>>, vector<1x256xf32>
    %cst = arith.constant dense<0.000000e+00> : vector<256xf32>
    %10 = vector.multi_reduction <add>, %7, %cst [0] : vector<4x256xf32> to vector<256xf32>
    %11 = vector.shape_cast %10 : vector<256xf32> to vector<1x256xf32>
    %12 = arith.addf %9, %11 : vector<1x256xf32>
    %c0_8 = arith.constant 0 : index
    %c0_9 = arith.constant 0 : index
    %13 = vector.load %arg5[%c0_8, %c0_9] : memref<1x256xf32, #tpu.memory_space<vmem>>, vector<1x256xf32>
    tpu.vector_store %arg5[%c0_8, %c0_9], %12 {strides = array<i32>} : memref<1x256xf32, #tpu.memory_space<vmem>>, vector<1x256xf32>,
    %c0_10 = arith.constant 0 : index
    %c0_11 = arith.constant 0 : index
    %14 = vector.load %arg6[%c0_10, %c0_11] : memref<1x256xf32, #tpu.memory_space<vmem>>, vector<1x256xf32>
    %cst_12 = arith.constant dense<0.000000e+00> : vector<256xf32>
    %15 = vector.multi_reduction <add>, %8, %cst_12 [0] : vector<4x256xf32> to vector<256xf32>
    %16 = vector.shape_cast %15 : vector<256xf32> to vector<1x256xf32>
    %17 = arith.addf %14, %16 : vector<1x256xf32>
    %c0_13 = arith.constant 0 : index
    %c0_14 = arith.constant 0 : index
    %18 = vector.load %arg6[%c0_13, %c0_14] : memref<1x256xf32, #tpu.memory_space<vmem>>, vector<1x256xf32>
    tpu.vector_store %arg6[%c0_13, %c0_14], %17 {strides = array<i32>} : memref<1x256xf32, #tpu.memory_space<vmem>>, vector<1x256xf32>,
    %c0_i32_15 = arith.constant 0 : i32
    %19 = arith.cmpi eq, %arg1, %c0_i32_15 : i32
    %20 = arith.extui %19 : i1 to i32
    %c0_i32_16 = arith.constant 0 : i32
    %21 = arith.cmpi ne, %20, %c0_i32_16 : i32
    scf.if %21 {
      %c0_17 = arith.constant 0 : index
      %c0_18 = arith.constant 0 : index
      %22 = vector.load %arg5[%c0_17, %c0_18] : memref<1x256xf32, #tpu.memory_space<vmem>>, vector<1x256xf32>
      %cst_19 = arith.constant dense<0.000000e+00> : vector<256xf32>
      %23 = vector.multi_reduction <add>, %22, %cst_19 [0] : vector<1x256xf32> to vector<256xf32>
      %24 = vector.shape_cast %23 : vector<256xf32> to vector<1x256xf32>
      %c0_20 = arith.constant 0 : index
      %c0_21 = arith.constant 0 : index
      %25 = vector.load %arg6[%c0_20, %c0_21] : memref<1x256xf32, #tpu.memory_space<vmem>>, vector<1x256xf32>
      %cst_22 = arith.constant dense<0.000000e+00> : vector<256xf32>
      %26 = vector.multi_reduction <add>, %25, %cst_22 [0] : vector<1x256xf32> to vector<256xf32>
      %27 = vector.shape_cast %26 : vector<256xf32> to vector<1x256xf32>
      %28 = arith.mulf %24, %24 : vector<1x256xf32>
      %29 = vector.shape_cast %28 : vector<1x256xf32> to vector<1x1x256xf32>
      %cst_23 = arith.constant dense<0.000000e+00> : vector<1xf32>
      %30 = vector.multi_reduction <add>, %29, %cst_23 [1, 2] : vector<1x1x256xf32> to vector<1xf32>
      %31 = vector.shape_cast %30 : vector<1xf32> to vector<1x1x1xf32>
      %32 = vector.extract %31[0, 0, 0] : f32 from vector<1x1x1xf32>
      %33 = math.sqrt %32 : f32
      %cst_24 = arith.constant 9.99999997E-7 : f32
      %34 = arith.addf %33, %cst_24 : f32
      %cst_25 = arith.constant 1.000000e+00 : f32
      %35 = arith.divf %cst_25, %34 : f32
      %36 = arith.mulf %27, %27 : vector<1x256xf32>
      %37 = vector.shape_cast %36 : vector<1x256xf32> to vector<1x1x256xf32>
      %cst_26 = arith.constant dense<0.000000e+00> : vector<1xf32>
      %38 = vector.multi_reduction <add>, %37, %cst_26 [1, 2] : vector<1x1x256xf32> to vector<1xf32>
      %39 = vector.shape_cast %38 : vector<1xf32> to vector<1x1x1xf32>
      %40 = vector.extract %39[0, 0, 0] : f32 from vector<1x1x1xf32>
      %41 = math.sqrt %40 : f32
      %cst_27 = arith.constant 9.99999997E-7 : f32
      %42 = arith.addf %41, %cst_27 : f32
      %cst_28 = arith.constant 1.000000e+00 : f32
      %43 = arith.divf %cst_28, %42 : f32
      %44 = vector.broadcast %35 : f32 to vector<1x256xf32>
      %45 = arith.mulf %24, %44 : vector<1x256xf32>
      %46 = vector.broadcast %43 : f32 to vector<1x256xf32>
      %47 = arith.mulf %27, %46 : vector<1x256xf32>
      %48 = arith.subf %45, %47 : vector<1x256xf32>
      %49 = arith.mulf %48, %48 : vector<1x256xf32>
      %50 = vector.shape_cast %49 : vector<1x256xf32> to vector<1x1x256xf32>
      %cst_29 = arith.constant dense<0.000000e+00> : vector<1xf32>
      %51 = vector.multi_reduction <add>, %50, %cst_29 [1, 2] : vector<1x1x256xf32> to vector<1xf32>
      %52 = vector.shape_cast %51 : vector<1xf32> to vector<1x1x1xf32>
      %53 = vector.extract %52[0, 0, 0] : f32 from vector<1x1x1xf32>
      %54 = vector.broadcast %53 : f32 to vector<8x128xf32>
      %c0_30 = arith.constant 0 : index
      %c0_31 = arith.constant 0 : index
      %c0_32 = arith.constant 0 : index
      %55 = vector.load %arg4[%c0_30, %c0_31, %c0_32] : memref<1x8x128xf32, #tpu.memory_space<vmem>>, vector<1x8x128xf32>
      %56 = vector.shape_cast %55 : vector<1x8x128xf32> to vector<8x128xf32>
      %57 = vector.shape_cast %54 : vector<8x128xf32> to vector<1x8x128xf32>
      tpu.vector_store %arg4[%c0_30, %c0_31, %c0_32], %57 {strides = array<i32>} : memref<1x8x128xf32, #tpu.memory_space<vmem>>, vector<1x8x128xf32>,
    } else {
    }
    return
  }
  func.func @transform_0(%arg0: i32, %arg1: i32) -> (i32, i32, i32) {
    %c0_i32 = arith.constant 0 : i32
    %c0_i32_0 = arith.constant 0 : i32
    return %arg0, %arg1, %c0_i32 : i32, i32, i32
  }
  func.func @transform_1(%arg0: i32, %arg1: i32) -> (i32, i32, i32) {
    %c0_i32 = arith.constant 0 : i32
    %c0_i32_0 = arith.constant 0 : i32
    return %arg0, %arg1, %c0_i32 : i32, i32, i32
  }
  func.func @transform_2(%arg0: i32, %arg1: i32) -> (i32, i32, i32) {
    %c0_i32 = arith.constant 0 : i32
    %c0_i32_0 = arith.constant 0 : i32
    %c0_i32_1 = arith.constant 0 : i32
    return %arg0, %c0_i32, %c0_i32_0 : i32, i32, i32
  }
}

</mosaic_0001>

<llo_original>
// kernel: tpu_custom_call.1
$region0: #{tpu_custom_call.1}
  #allocation0 [shape = 'u32[]', space=smem, size = 0x4, offset = 0x4, fixed_abs, tag = 'smem constant byte address 0x4 - core index']
  #allocation1 [shape = 'u32[144,128]{1,0:T(1,128)}', space=vmem, size = 0x12000, scoped, tag = 'internal scratch']
  #allocation2 [shape = 'f32[1,256]{1,0:T(1,128)}', space=vmem, size = 0x400, scoped, tag = 'scratch operand']
  #allocation3 [shape = 'f32[1,256]{1,0:T(1,128)}', space=vmem, size = 0x400, scoped, tag = 'scratch operand']
  %s0 = inlined_call_operand.hbm [shape: f32[2,4,256], index: 0, kind: input, shape index: {}]
  %s1 = inlined_call_operand.hbm [shape: f32[2,4,256], index: 1, kind: input, shape index: {}]
  %s2 = inlined_call_operand.hbm [shape: f32[2,8,128], index: 2, kind: output, shape index: {}]
  %s3 = sld [smem:[#allocation0]]
  $region57: #{tpu_custom_call.1} parent=0
    _
  %s5 = ssub.s32 1, %s3
  %s6 = scalar_select 0, %s5, %s3
  $region1: #{tpu_custom_call.1} parent=0
    #allocation4 [shape = 'u8[8192]{0}', space=vmem, size = 0x2000, scoped, tag = 'input window, operand 0']
    #allocation5 [shape = 's32[2]{0}', space=sflag, size = 0x8, scoped, tag = 'scoped memory for tpu_custom_call.1']
    #allocation6 [shape = 's32[2]{0}', space=sflag, size = 0x8, scoped, tag = 'scoped memory for tpu_custom_call.1']
    #allocation7 [shape = 'u8[8192]{0}', space=vmem, size = 0x2000, scoped, tag = 'input window, operand 1']
    #allocation8 [shape = 's32[2]{0}', space=sflag, size = 0x8, scoped, tag = 'scoped memory for tpu_custom_call.1']
    #allocation9 [shape = 'u8[8192]{0}', space=vmem, size = 0x2000, scoped, tag = 'output window, operand 0']
    %7 = vsyncpa [#allocation5], 0
    %s8 = scalar_lea.sflag [#allocation5], 1
    %9 = vsyncpa %s8, 0
    %10 = vsyncpa [#allocation8], 0
    %s11 = scalar_lea.sflag [#allocation8], 1
    %12 = vsyncpa %s11, 0
    %13 = vsyncpa [#allocation6], 0
    %s14 = scalar_lea.sflag [#allocation6], 1
    %15 = vsyncpa %s14, 0
    loop: start=0, step=1, limit=4
    $region2: #{tpu_custom_call.1} parent=1 // loop_pre_header
      _
    $region3: #{tpu_custom_call.1} parent=1 // loop_header
      %s17 = sphi 0, %s21
      %p18 = scmp.ge.s32.totalorder %s17, 4
      %s24 = sphi 0, %s36
      %s25 = sphi 0, %s32
      %s26 = sphi 0, %s24
      %s27 = sphi 0, %s25
      %s28 = sphi 0, %s26
      %s29 = sphi 0, %s27
      %s41 = sphi 0, %s43
      %s44 = sphi 0, %s41
      %s45 = sphi 0, %s44
      %s61 = sphi 0, %s45
      %s69 = sphi 0, %s71
      %s72 = sphi 0, %s69
      %s73 = sphi 0, %s72
      %s89 = sphi 0, %s73
      %s95 = sphi 0, %s97
      %s98 = sphi 0, %s95
      %s99 = sphi 0, %s98
      %s115 = sphi 0, %s99
    $region4: #{tpu_custom_call.1} parent=1 // loop_header_branch
      %20 = sbr.rel (%p18) target = $region8
    $region5: #{tpu_custom_call.1} parent=1 // loop_body
      %s22 = ssub.s32 %s17, 1
      %s23 = ssub.s32 %s17, 2
      %s30 = sadd.s32 1, %s25
      %p31 = scmp.ge.s32.totalorder %s30, 1
      %s32 = scalar_select %p31, 0, %s30
      %s33 = sadd.s32 1, %s24
      %s34 = scalar_select %p31, %s33, %s24
      %p35 = scmp.ge.s32.totalorder %s34, 2
      %s36 = scalar_select %p35, 0, %s34
      %s37 = ssub.s32 %s24, %s36
      %s38 = ssub.s32 %s25, %s32
      %s39 = sor.u32 %s37, %s38
      %p40 = scmp.eq.s32.totalorder %s39, 0
      %s42 = sadd.s32 %s41, 1
      %s43 = scalar_select %p40, %s41, %s42
      %p46 = pneg %p40
      %p47 = scmp.eq.s32.totalorder %s17, 1
      %p48 = por %p46, %p47
      %p49 = scmp.ne.s32.totalorder %s41, %s44
      %p50 = scmp.eq.s32.totalorder %s17, 0
      %p51 = por %p49, %p50
      %p52 = scmp.ne.s32.totalorder %s41, %s44
      %p53 = scmp.eq.s32.totalorder %s22, 1
      %p54 = por %p52, %p53
      %p55 = scmp.ne.s32.totalorder %s44, %s45
      %p56 = scmp.eq.s32.totalorder %s22, 0
      %p57 = por %p55, %p56
      %p58 = scmp.ne.s32.totalorder %s44, %s45
      %p59 = scmp.eq.s32.totalorder %s23, 1
      %p60 = por %p58, %p59
      %p62 = scmp.ne.s32.totalorder %s45, %s61
      %p63 = scmp.eq.s32.totalorder %s23, 0
      %p64 = por %p62, %p63
      %s65 = ssub.s32 %s24, %s36
      %s66 = ssub.s32 %s25, %s32
      %s67 = sor.u32 %s65, %s66
      %p68 = scmp.eq.s32.totalorder %s67, 0
      %s70 = sadd.s32 %s69, 1
      %s71 = scalar_select %p68, %s69, %s70
      %p74 = pneg %p68
      %p75 = scmp.eq.s32.totalorder %s17, 1
      %p76 = por %p74, %p75
      %p77 = scmp.ne.s32.totalorder %s69, %s72
      %p78 = scmp.eq.s32.totalorder %s17, 0
      %p79 = por %p77, %p78
      %p80 = scmp.ne.s32.totalorder %s69, %s72
      %p81 = scmp.eq.s32.totalorder %s22, 1
      %p82 = por %p80, %p81
      %p83 = scmp.ne.s32.totalorder %s72, %s73
      %p84 = scmp.eq.s32.totalorder %s22, 0
      %p85 = por %p83, %p84
      %p86 = scmp.ne.s32.totalorder %s72, %s73
      %p87 = scmp.eq.s32.totalorder %s23, 1
      %p88 = por %p86, %p87
      %p90 = scmp.ne.s32.totalorder %s73, %s89
      %p91 = scmp.eq.s32.totalorder %s23, 0
      %p92 = por %p90, %p91
      %s93 = ssub.s32 %s24, %s36
      %p94 = scmp.eq.s32.totalorder %s93, 0
      %s96 = sadd.s32 %s95, 1
      %s97 = scalar_select %p94, %s95, %s96
      %p100 = pneg %p94
      %p101 = scmp.eq.s32.totalorder %s17, 1
      %p102 = por %p100, %p101
      %p103 = scmp.ne.s32.totalorder %s95, %s98
      %p104 = scmp.eq.s32.totalorder %s17, 0
      %p105 = por %p103, %p104
      %p106 = scmp.ne.s32.totalorder %s95, %s98
      %p107 = scmp.eq.s32.totalorder %s22, 1
      %p108 = por %p106, %p107
      %p109 = scmp.ne.s32.totalorder %s98, %s99
      %p110 = scmp.eq.s32.totalorder %s22, 0
      %p111 = por %p109, %p110
      %p112 = scmp.ne.s32.totalorder %s98, %s99
      %p113 = scmp.eq.s32.totalorder %s23, 1
      %p114 = por %p112, %p113
      %p116 = scmp.ne.s32.totalorder %s99, %s115
      %p117 = scmp.eq.s32.totalorder %s23, 0
      %p118 = por %p116, %p117
      %p119 = scmp.le.s32.totalorder 1, %s17
      %p120 = scmp.lt.s32.totalorder %s17, 3
      %p121 = pnand %p119, %p120
      %p122 = pneg %p121
      // Predicated region
      $region9: #{tpu_custom_call.1} parent=5 // pred_check
        _
      $region10: #{tpu_custom_call.1} parent=5 // pred_check_branch
        %124 = sbr.rel (%p121) target = $region12
      $region11: #{tpu_custom_call.1} parent=5 // pred_region
        %s125 = ssub.s32 %s17, 1
      $region12: #{tpu_custom_call.1} parent=5 // pred_fallthru
        _
      %p126 = scmp.lt.s32.totalorder %s17, 2
      // Predicated region
      $region13: #{tpu_custom_call.1} parent=5 // pred_check
        %p127 = pneg %p126
      $region14: #{tpu_custom_call.1} parent=5 // pred_check_branch
        %129 = sbr.rel (%p127) target = $region16
      $region15: #{tpu_custom_call.1} parent=5 // pred_region
        // Predicated region
        $region17: #{tpu_custom_call.1} parent=15 // pred_check
          %p130 = pneg %p51
        $region18: #{tpu_custom_call.1} parent=15 // pred_check_branch
          %132 = sbr.rel (%p130) target = $region20
        $region19: #{tpu_custom_call.1} parent=15 // pred_region
          %s133 = sand.u32 %s41, 1
          %s134 = scalar_lea.sflag [#allocation5], %s133
          %s135 = sand.u32 %s41, 1
          %s136 = smul.addr %s135, 8
          %s137 = scalar_lea.vmem [#allocation4], %s136
          %s139 = ssub.s32 128, 128
          %140 = vsyncadd %s134, %s139
          %s141 = smul.addr %s25, 2
          %s142 = smul.addr %s24, 2
          %s143 = sadd.s32 %s141, %s142
          %s144 = smul.addr %s143, 64
          %s145 = scalar_lea.hbm %s0, %s144
          %s147 = sshll.u32 %s137, 4
          %s148 = int_to_ptr.vmem [resolvable:$true] %s147
          %150 = dma.hbm_to_vmem [thread:$0]  %s145, 128, %s148, %s134
        $region20: #{tpu_custom_call.1} parent=15 // pred_fallthru
          _
        // Predicated region
        $region21: #{tpu_custom_call.1} parent=15 // pred_check
          %p151 = pneg %p79
        $region22: #{tpu_custom_call.1} parent=15 // pred_check_branch
          %153 = sbr.rel (%p151) target = $region24
        $region23: #{tpu_custom_call.1} parent=15 // pred_region
          %s154 = sand.u32 %s69, 1
          %s155 = scalar_lea.sflag [#allocation8], %s154
          %s156 = sand.u32 %s69, 1
          %s157 = smul.addr %s156, 8
          %s158 = scalar_lea.vmem [#allocation7], %s157
          %s160 = ssub.s32 128, 128
          %161 = vsyncadd %s155, %s160
          %s162 = smul.addr %s25, 2
          %s163 = smul.addr %s24, 2
          %s164 = sadd.s32 %s162, %s163
          %s165 = smul.addr %s164, 64
          %s166 = scalar_lea.hbm %s1, %s165
          %s168 = sshll.u32 %s158, 4
          %s169 = int_to_ptr.vmem [resolvable:$true] %s168
          %171 = dma.hbm_to_vmem [thread:$0]  %s166, 128, %s169, %s155
        $region24: #{tpu_custom_call.1} parent=15 // pred_fallthru
          _
      $region16: #{tpu_custom_call.1} parent=5 // pred_fallthru
        _
      %p172 = scmp.le.s32.totalorder 1, %s17
      %p173 = scmp.lt.s32.totalorder %s17, 3
      %p174 = pnand %p172, %p173
      %p175 = pneg %p174
      // Predicated region
      $region25: #{tpu_custom_call.1} parent=5 // pred_check
        _
      $region26: #{tpu_custom_call.1} parent=5 // pred_check_branch
        %177 = sbr.rel (%p174) target = $region28
      $region27: #{tpu_custom_call.1} parent=5 // pred_region
        %s178 = ssub.s32 %s17, 1
        %s179 = sand.u32 %s44, 1
        %s180 = scalar_lea.sflag [#allocation5], %s179
        %s181 = sand.u32 %s44, 1
        %s182 = smul.addr %s181, 8
        %s183 = scalar_lea.vmem [#allocation4], %s182
        // Predicated region
        $region29: #{tpu_custom_call.1} parent=27 // pred_check
          %p184 = pneg %p57
        $region30: #{tpu_custom_call.1} parent=27 // pred_check_branch
          %186 = sbr.rel (%p184) target = $region32
        $region31: #{tpu_custom_call.1} parent=27 // pred_region
          %187 = dma.done %s180, 128
        $region32: #{tpu_custom_call.1} parent=27 // pred_fallthru
          _
        %s188 = sand.u32 %s72, 1
        %s189 = scalar_lea.sflag [#allocation8], %s188
        %s190 = sand.u32 %s72, 1
        %s191 = smul.addr %s190, 8
        %s192 = scalar_lea.vmem [#allocation7], %s191
        // Predicated region
        $region33: #{tpu_custom_call.1} parent=27 // pred_check
          %p193 = pneg %p85
        $region34: #{tpu_custom_call.1} parent=27 // pred_check_branch
          %195 = sbr.rel (%p193) target = $region36
        $region35: #{tpu_custom_call.1} parent=27 // pred_region
          %196 = dma.done %s189, 128
        $region36: #{tpu_custom_call.1} parent=27 // pred_fallthru
          _
        %s197 = sand.u32 %s44, 1
        %s198 = scalar_lea.sflag [#allocation5], %s197
        %s199 = sand.u32 %s44, 1
        %s200 = smul.addr %s199, 8
        %s201 = scalar_lea.vmem [#allocation4], %s200
        %p202 = pneg %p57
        %p203 = pneg %p54
        %s204 = sand.u32 %s72, 1
        %s205 = scalar_lea.sflag [#allocation8], %s204
        %s206 = sand.u32 %s72, 1
        %s207 = smul.addr %s206, 8
        %s208 = scalar_lea.vmem [#allocation7], %s207
        %p209 = pneg %p85
        %p210 = pneg %p82
        %p211 = pneg %p111
        %p212 = pneg %p108
        %s213 = sand.u32 %s98, 1
        %s214 = scalar_lea.sflag [#allocation6], %s213
        %s215 = sand.u32 %s98, 1
        %s216 = smul.addr %s215, 8
        %s217 = scalar_lea.vmem [#allocation9], %s216
        %p218 = scmp.eq.s32.totalorder %s27, 0
        // Predicated region
        $region37: #{tpu_custom_call.1} parent=27 // pred_check
          %p219 = pneg %p218
        $region38: #{tpu_custom_call.1} parent=27 // pred_check_branch
          %221 = sbr.rel (%p219) target = $region40
        $region39: #{tpu_custom_call.1} parent=27 // pred_region
          %v222 = vlaneseq
          %vm223 = vcmp.ge.s32.totalorder %v222, 0
          %vm224 = vcmp.lt.s32.totalorder %v222, 256
          %vm225 = vmand %vm223, %vm224
          %226 = vst.msk [vmem:[#allocation2] sm:$0x3] %vm225, 0.0
          %227 = vst.msk [vmem:[#allocation3] sm:$0x3] %vm225, 0.0
        $region40: #{tpu_custom_call.1} parent=27 // pred_fallthru
          _
        %v228 = vld [vmem:[%s183] sm:$0xff]
        %v229 = vld [vmem:[%s192] sm:$0xff]
        %v230 = vmul.f32 %v228, %v228
        %v231 = vmul.f32 %v229, %v229
        %v232 = vld [vmem:[#allocation2] sm:$0x3]
        %v234 = vcombine.high %v230, %v230
        %vm236 = vcmask 1043456
        %v237 = vsel %vm236, %v230, 0.0
        %v238 = vrot.slane %v237, 4
        %v239 = vadd.f32 %v237, %v238
        %v240 = vrot.slane %v239, 2
        %v241 = vadd.f32 %v239, %v240
        %v242 = vrot.slane %v241, 1
        %v243 = vadd.f32 %v241, %v242
        %v244 = vsel %vm236, %v234, 0.0
        %v245 = vrot.slane %v244, 4
        %v246 = vadd.f32 %v244, %v245
        %v247 = vrot.slane %v246, 2
        %v248 = vadd.f32 %v246, %v247
        %v249 = vrot.slane %v248, 1
        %v250 = vadd.f32 %v248, %v249
        %v253 = vcombine.low %v243, %v250
        %v255 = vunpack.c.l.s4 1966171168
        %v256 = vunpack.c.0.s8 %v255
        %v257 = vlaneseq
        %v258 = vshrl.u32 %v257, 7
        %v259 = vsub.s32 %v256, %v258
        %v260 = vrot.slane %v253, %v259
        %v262 = vunpack.c.l.s4 1966171168
        %v263 = vunpack.c.0.s8 %v262
        %v264 = vlaneseq
        %v265 = vshrl.u32 %v264, 7
        %v266 = vsub.s32 %v263, %v265
        %v267 = vrot.slane %v260, %v266
        %v269 = vadd.f32 %v232, %v267
        %v270 = vlaneseq
        %vm271 = vcmp.ge.s32.totalorder %v270, 0
        %vm272 = vcmp.lt.s32.totalorder %v270, 256
        %vm273 = vmand %vm271, %vm272
        %274 = vst.msk [vmem:[#allocation2] sm:$0x3] %vm273, %v269
        %v275 = vld [vmem:[#allocation3] sm:$0x3]
        %v277 = vcombine.high %v231, %v231
        %v279 = vsel %vm236, %v231, 0.0
        %v280 = vrot.slane %v279, 4
        %v281 = vadd.f32 %v279, %v280
        %v282 = vrot.slane %v281, 2
        %v283 = vadd.f32 %v281, %v282
        %v284 = vrot.slane %v283, 1
        %v285 = vadd.f32 %v283, %v284
        %v286 = vsel %vm236, %v277, 0.0
        %v287 = vrot.slane %v286, 4
        %v288 = vadd.f32 %v286, %v287
        %v289 = vrot.slane %v288, 2
        %v290 = vadd.f32 %v288, %v289
        %v291 = vrot.slane %v290, 1
        %v292 = vadd.f32 %v290, %v291
        %v295 = vcombine.low %v285, %v292
        %v297 = vunpack.c.l.s4 1966171168
        %v298 = vunpack.c.0.s8 %v297
        %v299 = vlaneseq
        %v300 = vshrl.u32 %v299, 7
        %v301 = vsub.s32 %v298, %v300
        %v302 = vrot.slane %v295, %v301
        %v304 = vunpack.c.l.s4 1966171168
        %v305 = vunpack.c.0.s8 %v304
        %v306 = vlaneseq
        %v307 = vshrl.u32 %v306, 7
        %v308 = vsub.s32 %v305, %v307
        %v309 = vrot.slane %v302, %v308
        %v311 = vadd.f32 %v275, %v309
        %312 = vst.msk [vmem:[#allocation3] sm:$0x3] %vm273, %v311
        // Predicated region
        $region41: #{tpu_custom_call.1} parent=27 // pred_check
          %p313 = pneg %p218
        $region42: #{tpu_custom_call.1} parent=27 // pred_check_branch
          %315 = sbr.rel (%p313) target = $region44
        $region43: #{tpu_custom_call.1} parent=27 // pred_region
          %v316 = vld [vmem:[#allocation2] sm:$0x3]
          %v317 = vadd.f32 %v316, 0.0
          %v318 = vld [vmem:[#allocation3] sm:$0x3]
          %v319 = vadd.f32 %v318, 0.0
          %v320 = vmul.f32 %v317, %v317
          %v322 = vlaneseq
          %v323 = vshrl.u32 %v322, 7
          %v324 = vsub.s32 0, %v323
          %v325 = vrot.slane %v320, %v324
          %v326 = vlaneseq
          %v327 = vshrl.u32 %v326, 7
          %v328 = vsub.s32 1, %v327
          %v329 = vrot.slane %v320, %v328
          %vm332 = vcmask 1040384
          %v333 = vsel %vm332, %v325, 0.0
          %v334 = vsel %vm332, %v329, 0.0
          %v335 = vadd.f32 %v333, %v334
          %336 = vadd.xlane.f32.xlu0 %v335
          %v337 = vpop.xlane.xlu0 %336
          %v338 = vrot.slane %v337, 4
          %v339 = vadd.f32 %v337, %v338
          %v340 = vrot.slane %v339, 2
          %v341 = vadd.f32 %v339, %v340
          %v342 = vrot.slane %v341, 1
          %v343 = vadd.f32 %v341, %v342
          %s344 = vtos %v343
          %v345 = vstv %s344
          %v346 = vrsqrt.pop %v345
          %v347 = vmul.f32 %v345, %v346
          %vm348 = vcmp.eq.f32.partialorder %v345, inf
          %v349 = vsel %vm348, %v345, %v347
          %vm350 = vcmp.eq.f32.partialorder %v345, 0.0
          %v351 = vand.u32 %v345, 2147483648
          %v352 = vsel %vm350, %v351, %v349
          %s353 = vtos %v352
          %s354 = sadd.f32 %s353, 1e-06
          %v355 = vstv %s354
          %v356 = vrcp.pop %v355
          %s357 = vtos %v356
          %v358 = vmul.f32 %v319, %v319
          %v360 = vlaneseq
          %v361 = vshrl.u32 %v360, 7
          %v362 = vsub.s32 0, %v361
          %v363 = vrot.slane %v358, %v362
          %v364 = vlaneseq
          %v365 = vshrl.u32 %v364, 7
          %v366 = vsub.s32 1, %v365
          %v367 = vrot.slane %v358, %v366
          %v370 = vsel %vm332, %v363, 0.0
          %v371 = vsel %vm332, %v367, 0.0
          %v372 = vadd.f32 %v370, %v371
          %373 = vadd.xlane.f32.xlu0 %v372
          %v374 = vpop.xlane.xlu0 %373
          %v375 = vrot.slane %v374, 4
          %v376 = vadd.f32 %v374, %v375
          %v377 = vrot.slane %v376, 2
          %v378 = vadd.f32 %v376, %v377
          %v379 = vrot.slane %v378, 1
          %v380 = vadd.f32 %v378, %v379
          %s381 = vtos %v380
          %v382 = vstv %s381
          %v383 = vrsqrt.pop %v382
          %v384 = vmul.f32 %v382, %v383
          %vm385 = vcmp.eq.f32.partialorder %v382, inf
          %v386 = vsel %vm385, %v382, %v384
          %vm387 = vcmp.eq.f32.partialorder %v382, 0.0
          %v388 = vand.u32 %v382, 2147483648
          %v389 = vsel %vm387, %v388, %v386
          %s390 = vtos %v389
          %s391 = sadd.f32 %s390, 1e-06
          %v392 = vstv %s391
          %v393 = vrcp.pop %v392
          %s394 = vtos %v393
          %v395 = vstv %s357
          %v396 = vmul.f32 %v317, %v395
          %v397 = vstv %s394
          %v398 = vmul.f32 %v319, %v397
          %v399 = vsub.f32 %v396, %v398
          %v400 = vmul.f32 %v399, %v399
          %v402 = vlaneseq
          %v403 = vshrl.u32 %v402, 7
          %v404 = vsub.s32 0, %v403
          %v405 = vrot.slane %v400, %v404
          %v406 = vlaneseq
          %v407 = vshrl.u32 %v406, 7
          %v408 = vsub.s32 1, %v407
          %v409 = vrot.slane %v400, %v408
          %v412 = vsel %vm332, %v405, 0.0
          %v413 = vsel %vm332, %v409, 0.0
          %v414 = vadd.f32 %v412, %v413
          %415 = vadd.xlane.f32.xlu0 %v414
          %v416 = vpop.xlane.xlu0 %415
          %v417 = vrot.slane %v416, 4
          %v418 = vadd.f32 %v416, %v417
          %v419 = vrot.slane %v418, 2
          %v420 = vadd.f32 %v418, %v419
          %v421 = vrot.slane %v420, 1
          %v422 = vadd.f32 %v420, %v421
          %s423 = vtos %v422
          %v424 = vstv %s423
          %425 = vst [vmem:[%s217] sm:$0xff] %v424
        $region44: #{tpu_custom_call.1} parent=27 // pred_fallthru
          _
        %s426 = sand.u32 %s98, 1
        %s427 = scalar_lea.sflag [#allocation6], %s426
        %s428 = sand.u32 %s98, 1
        %s429 = smul.addr %s428, 8
        %s430 = scalar_lea.vmem [#allocation9], %s429
        // Predicated region
        $region45: #{tpu_custom_call.1} parent=27 // pred_check
          %p431 = pneg %p108
        $region46: #{tpu_custom_call.1} parent=27 // pred_check_branch
          %433 = sbr.rel (%p431) target = $region48
        $region47: #{tpu_custom_call.1} parent=27 // pred_region
          %s435 = ssub.s32 128, 128
          %436 = vsyncadd %s427, %s435
          %s437 = smul.addr %s26, 128
          %s438 = scalar_lea.hbm %s2, %s437
          %s440 = sshll.u32 %s430, 4
          %s441 = int_to_ptr.vmem [resolvable:$true] %s440
          %443 = dma.vmem_to_hbm [thread:$0]  %s441, 128, %s438, %s427
        $region48: #{tpu_custom_call.1} parent=27 // pred_fallthru
          _
      $region28: #{tpu_custom_call.1} parent=5 // pred_fallthru
        _
      %p444 = scmp.le.s32.totalorder 2, %s17
      // Predicated region
      $region49: #{tpu_custom_call.1} parent=5 // pred_check
        %p445 = pneg %p444
      $region50: #{tpu_custom_call.1} parent=5 // pred_check_branch
        %447 = sbr.rel (%p445) target = $region52
      $region51: #{tpu_custom_call.1} parent=5 // pred_region
        %s448 = ssub.s32 %s17, 2
        // Predicated region
        $region53: #{tpu_custom_call.1} parent=51 // pred_check
          %p449 = pneg %p114
        $region54: #{tpu_custom_call.1} parent=51 // pred_check_branch
          %451 = sbr.rel (%p449) target = $region56
        $region55: #{tpu_custom_call.1} parent=51 // pred_region
          %s452 = sand.u32 %s99, 1
          %s453 = scalar_lea.sflag [#allocation6], %s452
          %s454 = sand.u32 %s99, 1
          %s455 = smul.addr %s454, 8
          %s456 = scalar_lea.vmem [#allocation9], %s455
          %457 = dma.done %s453, 128
        $region56: #{tpu_custom_call.1} parent=51 // pred_fallthru
          _
      $region52: #{tpu_custom_call.1} parent=5 // pred_fallthru
        _
    $region6: #{tpu_custom_call.1} parent=1 // loop_footer
      %s21 = sadd.s32 1, %s17
    $region7: #{tpu_custom_call.1} parent=1 // loop_footer_branch
      %16 = sbr.rel target = $region3
    $region8: #{tpu_custom_call.1} parent=1 // loop_exit
      _
    %458 = vsyncpa [#allocation5], 1
    %s459 = scalar_lea.sflag [#allocation5], 1
    %460 = vsyncpa %s459, 1
    %461 = vsyncpa [#allocation8], 1
    %s462 = scalar_lea.sflag [#allocation8], 1
    %463 = vsyncpa %s462, 1
    %464 = vsyncpa [#allocation6], 1
    %s465 = scalar_lea.sflag [#allocation6], 1
    %466 = vsyncpa %s465, 1

</llo_original>
